<compile_context>
chip_gen: v7x
topology: tpu7x:2x2x1
jax: 0.10.0
libtpu: 0.0.40
codegen_flags: <defaults>
</compile_context>

<pallas_src>
from functools import partial

import jax
import jax.numpy as jnp
import numpy as np
from jax.experimental import pallas as pl
from jax.experimental.pallas import tpu as pltpu

EPS = 1e-5  # nn.BatchNorm2d default eps


def basic_block_kernel(x_ref, w_ref, p_ref, o_ref, *, channels, inv_count):
    """Whole residual block in one grid step; activations lane-packed as (N*H, W*C).

    x_ref : (N, H, W*C)      f32 lane-packed input (free row-major reshape of NHWC)
    w_ref : (2, 3*W*C, W*C)  bf16 fused banded conv weights (conv1, conv2)
    p_ref : (4, W*C)         f32 [gamma1, beta1, gamma2, beta2], pre-tiled on lanes
    o_ref : (N*H, W*C)       f32 lane-dense output
    """
    N, H, WC = x_ref.shape
    NH = N * H
    C = channels

    x3 = x_ref[...]                                   # (N, H, WC) f32
    p = p_ref[...]                                    # (4, WC) f32

    def conv3x3(a3, w):
        # One fused MXU matmul per conv: the three vertical taps are stacked along the
        # lane (K) axis, so accumulation happens inside the MXU.  Horizontal taps and
        # 'SAME' zero padding in W are folded into the banded weight; vertical 'SAME'
        # padding is two zero rows per image.
        ab = a3.astype(jnp.bfloat16)                  # bf16 MXU operand
        z = jnp.zeros((N, 1, WC), jnp.bfloat16)
        apad = jnp.concatenate([z, ab, z], axis=1)    # (N, H+2, WC)
        lhs = jnp.concatenate(
            [apad[:, :H, :], ab, apad[:, 2:, :]], axis=-1)    # (N, H, 3*WC)
        return jnp.dot(lhs.reshape(NH, 3 * WC), w,
                       preferred_element_type=jnp.float32)    # (NH, WC) f32

    def channel_allreduce(row):
        # Sum the W lane slots of each channel and broadcast back: log2(W)-step
        # roll-and-add butterfly (XLU slot; result is independent of roll direction).
        shift = C
        while shift < WC:
            row = row + pltpu.roll(row, shift, 1)
            shift *= 2
        return row

    def batchnorm(acc, g, b):
        # Training-mode batch stats over (N, H, W), two-pass for stability; all f32.
        mean = channel_allreduce(jnp.sum(acc, axis=0, keepdims=True)) * inv_count
        d = acc - mean
        var = channel_allreduce(jnp.sum(d * d, axis=0, keepdims=True)) * inv_count
        scale = g * jax.lax.rsqrt(var + EPS)
        return d * scale + b

    y1 = jnp.maximum(batchnorm(conv3x3(x3, w_ref[0]), p[0:1, :], p[1:2, :]), 0.0)
    y2 = batchnorm(conv3x3(y1.reshape(N, H, WC), w_ref[1]), p[2:3, :], p[3:4, :])

    # identity residual (stride=1, downsample=None, Cin==Cout) + final ReLU, all f32.
    o_ref[...] = jnp.maximum(y2 + x3.reshape(NH, WC), 0.0)


def _fused_banded_weights(w_hwio, W):
    """HWIO (3,3,Ci,Co) -> fused banded matrix (3*W*Ci, W*Co).

    Block-row dh maps the lane-packed input row h-1+dh (lane = w'*Ci + ci) to the
    lane-packed conv output row h (lane = w*Co + co); 'SAME' zero padding along W is
    encoded by the band structure:  B[dh] = sum_dw  eye(W, k=1-dw) (x) Wt[dh, dw].
    """
    kh, kw, _, _ = w_hwio.shape
    w = w_hwio.astype(jnp.float32)
    slabs = [sum(jnp.kron(jnp.eye(W, W, k=1 - dw, dtype=jnp.float32), w[dh, dw])
                 for dw in range(kw))
             for dh in range(kh)]
    return jnp.concatenate(slabs, axis=0)             # (3*W*Ci, W*Co)


def basic_block_v1(x_nhwc, w1_hwio, w2_hwio, gamma1, beta1, gamma2, beta2):
    N, H, W, Cin = x_nhwc.shape
    Cout = w1_hwio.shape[-1]
    assert w1_hwio.shape == (3, 3, Cin, Cout)
    assert w2_hwio.shape == (3, 3, Cout, Cout)
    assert Cin == Cout            # identity residual path only
    assert W & (W - 1) == 0       # roll-and-add BN butterfly needs power-of-two W
    C = Cout
    WC = W * C

    # Lane-packed activations (free row-major reshape of NHWC), f32.
    x3d = x_nhwc.astype(jnp.float32).reshape(N, H, WC)

    # Fused banded conv weights, both convs coalesced into one bf16 array
    # (native MXU input dtype; halves weight HBM traffic).
    wb = jnp.stack([_fused_banded_weights(w1_hwio, W),
                    _fused_banded_weights(w2_hwio, W)]).astype(jnp.bfloat16)

    # gamma/beta tiled onto the packed lane axis (lane w*C + c holds value[c]),
    # coalesced into a single (4, WC) input.
    def packl(v):
        return jnp.tile(v.astype(jnp.float32).reshape(1, C), (1, W))

    p = jnp.concatenate([packl(gamma1), packl(beta1),
                         packl(gamma2), packl(beta2)], axis=0)

    kernel = partial(basic_block_kernel, channels=C,
                     inv_count=1.0 / float(N * H * W))

    out2d = pl.pallas_call(
        kernel,
        out_shape=jax.ShapeDtypeStruct((N * H, WC), jnp.float32),
        grid_spec=pltpu.PrefetchScalarGridSpec(
            num_scalar_prefetch=0,
            grid=(1,),
            in_specs=[
                pl.BlockSpec((N, H, WC), lambda i: (0, 0, 0)),
                pl.BlockSpec((2, 3 * WC, WC), lambda i: (0, 0, 0)),
                pl.BlockSpec((4, WC), lambda i: (0, 0)),
            ],
            out_specs=pl.BlockSpec((N * H, WC), lambda i: (0, 0)),
        ),
        compiler_params=pltpu.CompilerParams(
            dimension_semantics=("arbitrary",)),
    )(x3d, wb, p)

    return out2d.reshape(N, H, W, C)


def ref_basic_block(x_nhwc, w1, w2, g1, b1, g2, b2):
    """Pure-JAX reference (matches PyTorch forward in train mode, NHWC layout)."""
    dn = ("NHWC", "HWIO", "NHWC")

    def conv(x, w):
        return jax.lax.conv_general_dilated(x, w, (1, 1), "SAME",
                                            dimension_numbers=dn,
                                            precision=jax.lax.Precision.HIGHEST)

    def bn(y, g, b):
        m = jnp.mean(y, axis=(0, 1, 2))
        v = jnp.mean((y - m) ** 2, axis=(0, 1, 2))
        return (y - m) * jax.lax.rsqrt(v + EPS) * g + b

    out = jnp.maximum(bn(conv(x_nhwc, w1), g1, b1), 0.0)
    out = bn(conv(out, w2), g2, b2)
    return jnp.maximum(out + x_nhwc, 0.0)


if __name__ == "__main__":
    # inplanes = planes = 8, stride = 1, downsample = None  (W*C = 128 lane-dense)
    N, C, H, W = 2, 8, 16, 16
    key = jax.random.PRNGKey(0)
    k = jax.random.split(key, 7)

    # PyTorch-layout parameters/inputs, deterministic.
    x_nchw = jax.random.normal(k[0], (N, C, H, W), jnp.float32)         # NCHW
    w1_oihw = jax.random.normal(k[1], (C, C, 3, 3), jnp.float32) * 0.1  # OIHW
    w2_oihw = jax.random.normal(k[2], (C, C, 3, 3), jnp.float32) * 0.1
    gamma1 = 1.0 + 0.1 * jax.random.normal(k[3], (C,), jnp.float32)
    beta1 = 0.1 * jax.random.normal(k[4], (C,), jnp.float32)
    gamma2 = 1.0 + 0.1 * jax.random.normal(k[5], (C,), jnp.float32)
    beta2 = 0.1 * jax.random.normal(k[6], (C,), jnp.float32)

    # NCHW -> NHWC, OIHW -> HWIO for the kernel layout.
    x = jnp.transpose(x_nchw, (0, 2, 3, 1))
    w1 = jnp.transpose(w1_oihw, (2, 3, 1, 0))
    w2 = jnp.transpose(w2_oihw, (2, 3, 1, 0))

    out = basic_block_v1(x, w1, w2, gamma1, beta1, gamma2, beta2)
    out = jax.block_until_ready(out)

    ref = ref_basic_block(x, w1, w2, gamma1, beta1, gamma2, beta2)
    # Tolerance absorbs bf16 MXU operands (weights + activations; ~8 mantissa bits)
    # through two convolutions vs. the f32 HIGHEST-precision reference convolution.
    np.testing.assert_allclose(np.asarray(out), np.asarray(ref),
                               rtol=5e-2, atol=5e-2)
    print("KERNEL_OK")
</pallas_src>

<mosaic_0001>
module attributes {stable_mosaic.version = 11 : i64} {
  func.func @basic_block_kernel(%arg0: i32, %arg1: memref<2x16x128xf32, #tpu.memory_space<vmem>>, %arg2: memref<2x384x128xbf16, #tpu.memory_space<vmem>>, %arg3: memref<4x128xf32, #tpu.memory_space<vmem>>, %arg4: memref<32x128xf32, #tpu.memory_space<vmem>>) attributes {dimension_semantics = [#tpu.dimension_semantics<arbitrary>], iteration_bounds = array<i64: 1>, scalar_prefetch = 0 : i64, scratch_operands = 0 : i64, tpu.core_type = #tpu.core_type<tc>, window_params = [{pipeline_mode = #tpu.pipeline_mode<synchronous>, transform_indices = @transform_0, window_bounds = array<i64: 2, 16, 128>}, {pipeline_mode = #tpu.pipeline_mode<synchronous>, transform_indices = @transform_1, window_bounds = array<i64: 2, 384, 128>}, {pipeline_mode = #tpu.pipeline_mode<synchronous>, transform_indices = @transform_2, window_bounds = array<i64: 4, 128>}, {pipeline_mode = #tpu.pipeline_mode<synchronous>, transform_indices = @transform_3, window_bounds = array<i64: 32, 128>}]} {
    %c0 = arith.constant 0 : index
    %c0_0 = arith.constant 0 : index
    %c0_1 = arith.constant 0 : index
    %0 = vector.load %arg1[%c0, %c0_0, %c0_1] : memref<2x16x128xf32, #tpu.memory_space<vmem>>, vector<2x16x128xf32>
    %c0_2 = arith.constant 0 : index
    %c0_3 = arith.constant 0 : index
    %1 = vector.load %arg3[%c0_2, %c0_3] : memref<4x128xf32, #tpu.memory_space<vmem>>, vector<4x128xf32>
    %c0_4 = arith.constant 0 : index
    %c0_5 = arith.constant 0 : index
    %c0_6 = arith.constant 0 : index
    %2 = vector.load %arg2[%c0_4, %c0_5, %c0_6] : memref<2x384x128xbf16, #tpu.memory_space<vmem>>, vector<1x384x128xbf16>
    %3 = vector.shape_cast %2 : vector<1x384x128xbf16> to vector<384x128xbf16>
    %4 = arith.truncf %0 : vector<2x16x128xf32> to vector<2x16x128xbf16>
    %cst = arith.constant 0.000000e+00 : bf16
    %5 = vector.broadcast %cst : bf16 to vector<2x1x128xbf16>
    %6 = tpu.concatenate %5, %4, %5 in 1 : vector<2x1x128xbf16>, vector<2x16x128xbf16>, vector<2x1x128xbf16> -> vector<2x18x128xbf16>
    %7 = vector.extract_strided_slice %6 {offsets = [0, 0, 0], sizes = [2, 16, 128], strides = [1, 1, 1]} : vector<2x18x128xbf16> to vector<2x16x128xbf16>
    %8 = vector.extract_strided_slice %6 {offsets = [0, 2, 0], sizes = [2, 16, 128], strides = [1, 1, 1]} : vector<2x18x128xbf16> to vector<2x16x128xbf16>
    %9 = tpu.concatenate %7, %4, %8 in 2 : vector<2x16x128xbf16>, vector<2x16x128xbf16>, vector<2x16x128xbf16> -> vector<2x16x384xbf16>
    %10 = vector.shape_cast %9 : vector<2x16x384xbf16> to vector<32x384xbf16>
    %cst_7 = arith.constant dense<0.000000e+00> : vector<32x128xf32>
    %11 = tpu.matmul %10, %3, %cst_7 {dimension_numbers = #tpu.dot_dimension_numbers<[1], [0], [0], [1], [0, 0, 1, 1], [], []>} : vector<32x384xbf16>, vector<384x128xbf16>, vector<32x128xf32> -> vector<32x128xf32>
    %12 = vector.extract_strided_slice %1 {offsets = [0, 0], sizes = [1, 128], strides = [1, 1]} : vector<4x128xf32> to vector<1x128xf32>
    %13 = vector.extract_strided_slice %1 {offsets = [1, 0], sizes = [1, 128], strides = [1, 1]} : vector<4x128xf32> to vector<1x128xf32>
    %cst_8 = arith.constant dense<0.000000e+00> : vector<128xf32>
    %14 = vector.multi_reduction <add>, %11, %cst_8 [0] : vector<32x128xf32> to vector<128xf32>
    %15 = vector.shape_cast %14 : vector<128xf32> to vector<1x128xf32>
    %c8_i32 = arith.constant 8 : i32
    %16 = tpu.dynamic_rotate %15 by %c8_i32 dim 1 : vector<1x128xf32>, i32 -> vector<1x128xf32>
    %17 = arith.addf %15, %16 : vector<1x128xf32>
    %c16_i32 = arith.constant 16 : i32
    %18 = tpu.dynamic_rotate %17 by %c16_i32 dim 1 : vector<1x128xf32>, i32 -> vector<1x128xf32>
    %19 = arith.addf %17, %18 : vector<1x128xf32>
    %c32_i32 = arith.constant 32 : i32
    %20 = tpu.dynamic_rotate %19 by %c32_i32 dim 1 : vector<1x128xf32>, i32 -> vector<1x128xf32>
    %21 = arith.addf %19, %20 : vector<1x128xf32>
    %c64_i32 = arith.constant 64 : i32
    %22 = tpu.dynamic_rotate %21 by %c64_i32 dim 1 : vector<1x128xf32>, i32 -> vector<1x128xf32>
    %23 = arith.addf %21, %22 : vector<1x128xf32>
    %cst_9 = arith.constant 0.001953125 : f32
    %24 = vector.broadcast %cst_9 : f32 to vector<1x128xf32>
    %25 = arith.mulf %23, %24 : vector<1x128xf32>
    %26 = vector.broadcast %25 : vector<1x128xf32> to vector<32x128xf32>
    %27 = arith.subf %11, %26 : vector<32x128xf32>
    %28 = arith.mulf %27, %27 : vector<32x128xf32>
    %cst_10 = arith.constant dense<0.000000e+00> : vector<128xf32>
    %29 = vector.multi_reduction <add>, %28, %cst_10 [0] : vector<32x128xf32> to vector<128xf32>
    %30 = vector.shape_cast %29 : vector<128xf32> to vector<1x128xf32>
    %c8_i32_11 = arith.constant 8 : i32
    %31 = tpu.dynamic_rotate %30 by %c8_i32_11 dim 1 : vector<1x128xf32>, i32 -> vector<1x128xf32>
    %32 = arith.addf %30, %31 : vector<1x128xf32>
    %c16_i32_12 = arith.constant 16 : i32
    %33 = tpu.dynamic_rotate %32 by %c16_i32_12 dim 1 : vector<1x128xf32>, i32 -> vector<1x128xf32>
    %34 = arith.addf %32, %33 : vector<1x128xf32>
    %c32_i32_13 = arith.constant 32 : i32
    %35 = tpu.dynamic_rotate %34 by %c32_i32_13 dim 1 : vector<1x128xf32>, i32 -> vector<1x128xf32>
    %36 = arith.addf %34, %35 : vector<1x128xf32>
    %c64_i32_14 = arith.constant 64 : i32
    %37 = tpu.dynamic_rotate %36 by %c64_i32_14 dim 1 : vector<1x128xf32>, i32 -> vector<1x128xf32>
    %38 = arith.addf %36, %37 : vector<1x128xf32>
    %cst_15 = arith.constant 0.001953125 : f32
    %39 = vector.broadcast %cst_15 : f32 to vector<1x128xf32>
    %40 = arith.mulf %38, %39 : vector<1x128xf32>
    %cst_16 = arith.constant 9.99999974E-6 : f32
    %41 = vector.broadcast %cst_16 : f32 to vector<1x128xf32>
    %42 = arith.addf %40, %41 : vector<1x128xf32>
    %43 = math.rsqrt %42 : vector<1x128xf32>
    %44 = arith.mulf %12, %43 : vector<1x128xf32>
    %45 = vector.broadcast %44 : vector<1x128xf32> to vector<32x128xf32>
    %46 = arith.mulf %27, %45 : vector<32x128xf32>
    %47 = vector.broadcast %13 : vector<1x128xf32> to vector<32x128xf32>
    %48 = arith.addf %46, %47 : vector<32x128xf32>
    %cst_17 = arith.constant 0.000000e+00 : f32
    %49 = vector.broadcast %cst_17 : f32 to vector<32x128xf32>
    %50 = arith.maximumf %48, %49 : vector<32x128xf32>
    %51 = vector.shape_cast %50 : vector<32x128xf32> to vector<2x16x128xf32>
    %c1 = arith.constant 1 : index
    %c0_18 = arith.constant 0 : index
    %c0_19 = arith.constant 0 : index
    %52 = vector.load %arg2[%c1, %c0_18, %c0_19] : memref<2x384x128xbf16, #tpu.memory_space<vmem>>, vector<1x384x128xbf16>
    %53 = vector.shape_cast %52 : vector<1x384x128xbf16> to vector<384x128xbf16>
    %54 = arith.truncf %51 : vector<2x16x128xf32> to vector<2x16x128xbf16>
    %cst_20 = arith.constant 0.000000e+00 : bf16
    %55 = vector.broadcast %cst_20 : bf16 to vector<2x1x128xbf16>
    %56 = tpu.concatenate %55, %54, %55 in 1 : vector<2x1x128xbf16>, vector<2x16x128xbf16>, vector<2x1x128xbf16> -> vector<2x18x128xbf16>
    %57 = vector.extract_strided_slice %56 {offsets = [0, 0, 0], sizes = [2, 16, 128], strides = [1, 1, 1]} : vector<2x18x128xbf16> to vector<2x16x128xbf16>
    %58 = vector.extract_strided_slice %56 {offsets = [0, 2, 0], sizes = [2, 16, 128], strides = [1, 1, 1]} : vector<2x18x128xbf16> to vector<2x16x128xbf16>
    %59 = tpu.concatenate %57, %54, %58 in 2 : vector<2x16x128xbf16>, vector<2x16x128xbf16>, vector<2x16x128xbf16> -> vector<2x16x384xbf16>
    %60 = vector.shape_cast %59 : vector<2x16x384xbf16> to vector<32x384xbf16>
    %cst_21 = arith.constant dense<0.000000e+00> : vector<32x128xf32>
    %61 = tpu.matmul %60, %53, %cst_21 {dimension_numbers = #tpu.dot_dimension_numbers<[1], [0], [0], [1], [0, 0, 1, 1], [], []>} : vector<32x384xbf16>, vector<384x128xbf16>, vector<32x128xf32> -> vector<32x128xf32>
    %62 = vector.extract_strided_slice %1 {offsets = [2, 0], sizes = [1, 128], strides = [1, 1]} : vector<4x128xf32> to vector<1x128xf32>
    %63 = vector.extract_strided_slice %1 {offsets = [3, 0], sizes = [1, 128], strides = [1, 1]} : vector<4x128xf32> to vector<1x128xf32>
    %cst_22 = arith.constant dense<0.000000e+00> : vector<128xf32>
    %64 = vector.multi_reduction <add>, %61, %cst_22 [0] : vector<32x128xf32> to vector<128xf32>
    %65 = vector.shape_cast %64 : vector<128xf32> to vector<1x128xf32>
    %c8_i32_23 = arith.constant 8 : i32
    %66 = tpu.dynamic_rotate %65 by %c8_i32_23 dim 1 : vector<1x128xf32>, i32 -> vector<1x128xf32>
    %67 = arith.addf %65, %66 : vector<1x128xf32>
    %c16_i32_24 = arith.constant 16 : i32
    %68 = tpu.dynamic_rotate %67 by %c16_i32_24 dim 1 : vector<1x128xf32>, i32 -> vector<1x128xf32>
    %69 = arith.addf %67, %68 : vector<1x128xf32>
    %c32_i32_25 = arith.constant 32 : i32
    %70 = tpu.dynamic_rotate %69 by %c32_i32_25 dim 1 : vector<1x128xf32>, i32 -> vector<1x128xf32>
    %71 = arith.addf %69, %70 : vector<1x128xf32>
    %c64_i32_26 = arith.constant 64 : i32
    %72 = tpu.dynamic_rotate %71 by %c64_i32_26 dim 1 : vector<1x128xf32>, i32 -> vector<1x128xf32>
    %73 = arith.addf %71, %72 : vector<1x128xf32>
    %cst_27 = arith.constant 0.001953125 : f32
    %74 = vector.broadcast %cst_27 : f32 to vector<1x128xf32>
    %75 = arith.mulf %73, %74 : vector<1x128xf32>
    %76 = vector.broadcast %75 : vector<1x128xf32> to vector<32x128xf32>
    %77 = arith.subf %61, %76 : vector<32x128xf32>
    %78 = arith.mulf %77, %77 : vector<32x128xf32>
    %cst_28 = arith.constant dense<0.000000e+00> : vector<128xf32>
    %79 = vector.multi_reduction <add>, %78, %cst_28 [0] : vector<32x128xf32> to vector<128xf32>
    %80 = vector.shape_cast %79 : vector<128xf32> to vector<1x128xf32>
    %c8_i32_29 = arith.constant 8 : i32
    %81 = tpu.dynamic_rotate %80 by %c8_i32_29 dim 1 : vector<1x128xf32>, i32 -> vector<1x128xf32>
    %82 = arith.addf %80, %81 : vector<1x128xf32>
    %c16_i32_30 = arith.constant 16 : i32
    %83 = tpu.dynamic_rotate %82 by %c16_i32_30 dim 1 : vector<1x128xf32>, i32 -> vector<1x128xf32>
    %84 = arith.addf %82, %83 : vector<1x128xf32>
    %c32_i32_31 = arith.constant 32 : i32
    %85 = tpu.dynamic_rotate %84 by %c32_i32_31 dim 1 : vector<1x128xf32>, i32 -> vector<1x128xf32>
    %86 = arith.addf %84, %85 : vector<1x128xf32>
    %c64_i32_32 = arith.constant 64 : i32
    %87 = tpu.dynamic_rotate %86 by %c64_i32_32 dim 1 : vector<1x128xf32>, i32 -> vector<1x128xf32>
    %88 = arith.addf %86, %87 : vector<1x128xf32>
    %cst_33 = arith.constant 0.001953125 : f32
    %89 = vector.broadcast %cst_33 : f32 to vector<1x128xf32>
    %90 = arith.mulf %88, %89 : vector<1x128xf32>
    %cst_34 = arith.constant 9.99999974E-6 : f32
    %91 = vector.broadcast %cst_34 : f32 to vector<1x128xf32>
    %92 = arith.addf %90, %91 : vector<1x128xf32>
    %93 = math.rsqrt %92 : vector<1x128xf32>
    %94 = arith.mulf %62, %93 : vector<1x128xf32>
    %95 = vector.broadcast %94 : vector<1x128xf32> to vector<32x128xf32>
    %96 = arith.mulf %77, %95 : vector<32x128xf32>
    %97 = vector.broadcast %63 : vector<1x128xf32> to vector<32x128xf32>
    %98 = arith.addf %96, %97 : vector<32x128xf32>
    %99 = vector.shape_cast %0 : vector<2x16x128xf32> to vector<32x128xf32>
    %100 = arith.addf %98, %99 : vector<32x128xf32>
    %cst_35 = arith.constant 0.000000e+00 : f32
    %101 = vector.broadcast %cst_35 : f32 to vector<32x128xf32>
    %102 = arith.maximumf %100, %101 : vector<32x128xf32>
    %c0_36 = arith.constant 0 : index
    %c0_37 = arith.constant 0 : index
    %103 = vector.load %arg4[%c0_36, %c0_37] : memref<32x128xf32, #tpu.memory_space<vmem>>, vector<32x128xf32>
    tpu.vector_store %arg4[%c0_36, %c0_37], %102 {strides = array<i32>} : memref<32x128xf32, #tpu.memory_space<vmem>>, vector<32x128xf32>,
    return
  }
  func.func @transform_0(%arg0: i32) -> (i32, i32, i32) {
    %c0_i32 = arith.constant 0 : i32
    %c0_i32_0 = arith.constant 0 : i32
    %c0_i32_1 = arith.constant 0 : i32
    %c0_i32_2 = arith.constant 0 : i32
    return %c0_i32, %c0_i32_0, %c0_i32_1 : i32, i32, i32
  }
  func.func @transform_1(%arg0: i32) -> (i32, i32, i32) {
    %c0_i32 = arith.constant 0 : i32
    %c0_i32_0 = arith.constant 0 : i32
    %c0_i32_1 = arith.constant 0 : i32
    %c0_i32_2 = arith.constant 0 : i32
    return %c0_i32, %c0_i32_0, %c0_i32_1 : i32, i32, i32
  }
  func.func @transform_2(%arg0: i32) -> (i32, i32) {
    %c0_i32 = arith.constant 0 : i32
    %c0_i32_0 = arith.constant 0 : i32
    %c0_i32_1 = arith.constant 0 : i32
    return %c0_i32, %c0_i32_0 : i32, i32
  }
  func.func @transform_3(%arg0: i32) -> (i32, i32) {
    %c0_i32 = arith.constant 0 : i32
    %c0_i32_0 = arith.constant 0 : i32
    %c0_i32_1 = arith.constant 0 : i32
    return %c0_i32, %c0_i32_0 : i32, i32
  }
}

</mosaic_0001>

<llo_original>
// kernel: tpu_custom_call.1
$region0: #{tpu_custom_call.1}
  #allocation0 [shape = 'u32[]', space=smem, size = 0x4, offset = 0x4, fixed_abs, tag = 'smem constant byte address 0x4 - core index']
  #allocation1 [shape = 'u32[144,128]{1,0:T(1,128)}', space=vmem, size = 0x12000, scoped, tag = 'internal scratch']
  %s0 = inlined_call_operand.hbm [shape: f32[2,16,128], index: 0, kind: input, shape index: {}]
  %s1 = inlined_call_operand.hbm [shape: bf16[2,384,128], index: 1, kind: input, shape index: {}]
  %s2 = inlined_call_operand.vmem [shape: f32[4,128], index: 2, kind: input, shape index: {}]
  %s3 = inlined_call_operand.hbm [shape: f32[32,128], index: 3, kind: output, shape index: {}]
  %s4 = sld [smem:[#allocation0]]
  $region30: #{tpu_custom_call.1} parent=0
    _
  %s6 = ssub.s32 1, %s4
  %s7 = scalar_select 0, %s6, %s4
  $region1: #{tpu_custom_call.1} parent=0
    #allocation2 [shape = 'u8[16384]{0}', space=vmem, size = 0x4000, scoped, tag = 'input window, operand 0, single buffered']
    #allocation3 [shape = 's32[1]{0}', space=sflag, size = 0x4, scoped, tag = 'scoped memory for tpu_custom_call.1']
    #allocation4 [shape = 's32[1]{0}', space=sflag, size = 0x4, scoped, tag = 'scoped memory for tpu_custom_call.1']
    #allocation5 [shape = 'u8[196608]{0}', space=vmem, size = 0x30000, scoped, tag = 'input window, operand 1, single buffered']
    #allocation6 [shape = 's32[1]{0}', space=sflag, size = 0x4, scoped, tag = 'scoped memory for tpu_custom_call.1']
    #allocation7 [shape = 'u8[16384]{0}', space=vmem, size = 0x4000, scoped, tag = 'output window, operand 0, single buffered']
    %8 = vsyncpa [#allocation3], 0
    %9 = vsyncpa [#allocation6], 0
    %10 = vsyncpa [#allocation4], 0
    // Predicated region
    $region2: #{tpu_custom_call.1} parent=1 // pred_check
      _
    $region3: #{tpu_custom_call.1} parent=1 // pred_check_branch
      %12 = sbr.rel (0) target = $region5
    $region4: #{tpu_custom_call.1} parent=1 // pred_region
      %s14 = ssub.s32 512, 512
      %15 = vsyncadd [#allocation3], %s14
      %s16 = sshll.u32 [#allocation2], 4
      %s17 = int_to_ptr.vmem [resolvable:$true] %s16
      %22 = dma.hbm_to_vmem [thread:$0]  %s0, 512, %s17, [#allocation3], 128, 128, 8
    $region5: #{tpu_custom_call.1} parent=1 // pred_fallthru
      _
    // Predicated region
    $region6: #{tpu_custom_call.1} parent=1 // pred_check
      _
    $region7: #{tpu_custom_call.1} parent=1 // pred_check_branch
      %24 = sbr.rel (0) target = $region9
    $region8: #{tpu_custom_call.1} parent=1 // pred_region
      %s26 = ssub.s32 6144, 6144
      %27 = vsyncadd [#allocation6], %s26
      %s28 = sshll.u32 [#allocation5], 4
      %s29 = int_to_ptr.vmem [resolvable:$true] %s28
      %34 = dma.hbm_to_vmem [thread:$0]  %s1, 6144, %s29, [#allocation6], 64, 64, 4
    $region9: #{tpu_custom_call.1} parent=1 // pred_fallthru
      _
    // Predicated region
    $region10: #{tpu_custom_call.1} parent=1 // pred_check
      _
    $region11: #{tpu_custom_call.1} parent=1 // pred_check_branch
      %36 = sbr.rel (0) target = $region13
    $region12: #{tpu_custom_call.1} parent=1 // pred_region
      _
    $region13: #{tpu_custom_call.1} parent=1 // pred_fallthru
      _
    // Predicated region
    $region14: #{tpu_custom_call.1} parent=1 // pred_check
      _
    $region15: #{tpu_custom_call.1} parent=1 // pred_check_branch
      %38 = sbr.rel (0) target = $region17
    $region16: #{tpu_custom_call.1} parent=1 // pred_region
      %39 = dma.done [#allocation3], 512
    $region17: #{tpu_custom_call.1} parent=1 // pred_fallthru
      _
    // Predicated region
    $region18: #{tpu_custom_call.1} parent=1 // pred_check
      _
    $region19: #{tpu_custom_call.1} parent=1 // pred_check_branch
      %41 = sbr.rel (0) target = $region21
    $region20: #{tpu_custom_call.1} parent=1 // pred_region
      %42 = dma.done [#allocation6], 6144
    $region21: #{tpu_custom_call.1} parent=1 // pred_fallthru
      _
    %v44 = vld [vmem:[#allocation2] sm:$0xff]
    %v45 = vld [vmem:[#allocation2 + $0x8] sm:$0xff]
    %v46 = vld [vmem:[#allocation2 + $0x10] sm:$0xff]
    %v47 = vld [vmem:[#allocation2 + $0x18] sm:$0xff]
    %v48 = vld [vmem:[%s2] sm:$0xf]
    %v49 = vld [vmem:[#allocation5] sm:$0xf]
    %v50 = vld [vmem:[#allocation5 + $0x4] sm:$0xf]
    %v51 = vld [vmem:[#allocation5 + $0x8] sm:$0xf]
    %v52 = vld [vmem:[#allocation5 + $0xc] sm:$0xf]
    %v53 = vld [vmem:[#allocation5 + $0x10] sm:$0xf]
    %v54 = vld [vmem:[#allocation5 + $0x14] sm:$0xf]
    %v55 = vld [vmem:[#allocation5 + $0x18] sm:$0xf]
    %v56 = vld [vmem:[#allocation5 + $0x1c] sm:$0xf]
    %v57 = vld [vmem:[#allocation5 + $0x20] sm:$0xf]
    %v58 = vld [vmem:[#allocation5 + $0x24] sm:$0xf]
    %v59 = vld [vmem:[#allocation5 + $0x28] sm:$0xf]
    %v60 = vld [vmem:[#allocation5 + $0x2c] sm:$0xf]
    %v61 = vld [vmem:[#allocation5 + $0x30] sm:$0xf]
    %v62 = vld [vmem:[#allocation5 + $0x34] sm:$0xf]
    %v63 = vld [vmem:[#allocation5 + $0x38] sm:$0xf]
    %v64 = vld [vmem:[#allocation5 + $0x3c] sm:$0xf]
    %v65 = vld [vmem:[#allocation5 + $0x40] sm:$0xf]
    %v66 = vld [vmem:[#allocation5 + $0x44] sm:$0xf]
    %v67 = vld [vmem:[#allocation5 + $0x48] sm:$0xf]
    %v68 = vld [vmem:[#allocation5 + $0x4c] sm:$0xf]
    %v69 = vld [vmem:[#allocation5 + $0x50] sm:$0xf]
    %v70 = vld [vmem:[#allocation5 + $0x54] sm:$0xf]
    %v71 = vld [vmem:[#allocation5 + $0x58] sm:$0xf]
    %v72 = vld [vmem:[#allocation5 + $0x5c] sm:$0xf]
    %v73 = vld [vmem:[#allocation5 + $0x60] sm:$0xf]
    %v74 = vld [vmem:[#allocation5 + $0x64] sm:$0xf]
    %v75 = vld [vmem:[#allocation5 + $0x68] sm:$0xf]
    %v76 = vld [vmem:[#allocation5 + $0x6c] sm:$0xf]
    %v77 = vld [vmem:[#allocation5 + $0x70] sm:$0xf]
    %v78 = vld [vmem:[#allocation5 + $0x74] sm:$0xf]
    %v79 = vld [vmem:[#allocation5 + $0x78] sm:$0xf]
    %v80 = vld [vmem:[#allocation5 + $0x7c] sm:$0xf]
    %v81 = vld [vmem:[#allocation5 + $0x80] sm:$0xf]
    %v82 = vld [vmem:[#allocation5 + $0x84] sm:$0xf]
    %v83 = vld [vmem:[#allocation5 + $0x88] sm:$0xf]
    %v84 = vld [vmem:[#allocation5 + $0x8c] sm:$0xf]
    %v85 = vld [vmem:[#allocation5 + $0x90] sm:$0xf]
    %v86 = vld [vmem:[#allocation5 + $0x94] sm:$0xf]
    %v87 = vld [vmem:[#allocation5 + $0x98] sm:$0xf]
    %v88 = vld [vmem:[#allocation5 + $0x9c] sm:$0xf]
    %v89 = vld [vmem:[#allocation5 + $0xa0] sm:$0xf]
    %v90 = vld [vmem:[#allocation5 + $0xa4] sm:$0xf]
    %v91 = vld [vmem:[#allocation5 + $0xa8] sm:$0xf]
    %v92 = vld [vmem:[#allocation5 + $0xac] sm:$0xf]
    %v93 = vld [vmem:[#allocation5 + $0xb0] sm:$0xf]
    %v94 = vld [vmem:[#allocation5 + $0xb4] sm:$0xf]
    %v95 = vld [vmem:[#allocation5 + $0xb8] sm:$0xf]
    %v96 = vld [vmem:[#allocation5 + $0xbc] sm:$0xf]
    %v97 = vpack.c.bf16 %v45, %v44
    %v98 = vpack.c.bf16 %v47, %v46
    %v100 = vshrl.u32 %v97, 16
    %v102 = vrot.slane %v100, 7
    %v103 = vshll.u32 %v97, 16
    %v105 = vor.u32 %v102, %v103
    %v107 = vshrl.u32 %v98, 16
    %v109 = vrot.slane %v107, 7
    %v110 = vshll.u32 %v98, 16
    %v112 = vor.u32 %v109, %v110
    %vm117 = vcmask 1040384
    %vm118 = vsmask.f32 256
    %vm119 = vmand %vm117, %vm118
    %v120 = vsel %vm119, 0, %v105
    %v121 = vsel %vm119, 0, %v112
    %v122 = vsel %vm119, %v102, 0
    %v123 = vsel %vm119, %v109, 0
    %vm128 = vcmask 1046528
    %v129 = vrot.slane %v120, 1
    %v130 = vrot.slane %v122, 1
    %v131 = vsel %vm128, %v129, %v130
    %v132 = vrot.slane %v121, 1
    %v133 = vrot.slane %v123, 1
    %v134 = vsel %vm128, %v132, %v133
    %v185 = vunpack.c.l.b16 %v49
    %v186 = vunpack.c.l.b16 %v50
    %v187 = vunpack.c.l.b16 %v51
    %v188 = vunpack.c.l.b16 %v52
    %v189 = vunpack.c.l.b16 %v53
    %v190 = vunpack.c.l.b16 %v54
    %v191 = vunpack.c.l.b16 %v55
    %v192 = vunpack.c.l.b16 %v56
    %v193 = vunpack.c.l.b16 %v57
    %v194 = vunpack.c.l.b16 %v58
    %v195 = vunpack.c.l.b16 %v59
    %v196 = vunpack.c.l.b16 %v60
    %v197 = vunpack.c.l.b16 %v61
    %v198 = vunpack.c.l.b16 %v62
    %v199 = vunpack.c.l.b16 %v63
    %v200 = vunpack.c.l.b16 %v64
    %v201 = vunpack.c.l.b16 %v65
    %v202 = vunpack.c.l.b16 %v66
    %v203 = vunpack.c.l.b16 %v67
    %v204 = vunpack.c.l.b16 %v68
    %v205 = vunpack.c.l.b16 %v69
    %v206 = vunpack.c.l.b16 %v70
    %v207 = vunpack.c.l.b16 %v71
    %v208 = vunpack.c.l.b16 %v72
    %v209 = vunpack.c.l.b16 %v73
    %v210 = vunpack.c.l.b16 %v74
    %v211 = vunpack.c.l.b16 %v75
    %v212 = vunpack.c.l.b16 %v76
    %v213 = vunpack.c.l.b16 %v77
    %v214 = vunpack.c.l.b16 %v78
    %v215 = vunpack.c.l.b16 %v79
    %v216 = vunpack.c.l.b16 %v80
    %v217 = vunpack.c.l.b16 %v81
    %v218 = vunpack.c.l.b16 %v82
    %v219 = vunpack.c.l.b16 %v83
    %v220 = vunpack.c.l.b16 %v84
    %v221 = vunpack.c.l.b16 %v85
    %v222 = vunpack.c.l.b16 %v86
    %v223 = vunpack.c.l.b16 %v87
    %v224 = vunpack.c.l.b16 %v88
    %v225 = vunpack.c.l.b16 %v89
    %v226 = vunpack.c.l.b16 %v90
    %v227 = vunpack.c.l.b16 %v91
    %v228 = vunpack.c.l.b16 %v92
    %v229 = vunpack.c.l.b16 %v93
    %v230 = vunpack.c.l.b16 %v94
    %v231 = vunpack.c.l.b16 %v95
    %v232 = vunpack.c.l.b16 %v96
    %v233 = vpack.c.b16 %v186, %v185
    %v234 = vpack.c.b16 %v188, %v187
    %v235 = vpack.c.b16 %v190, %v189
    %v236 = vpack.c.b16 %v192, %v191
    %v237 = vpack.c.b16 %v194, %v193
    %v238 = vpack.c.b16 %v196, %v195
    %v239 = vpack.c.b16 %v198, %v197
    %v240 = vpack.c.b16 %v200, %v199
    %v241 = vpack.c.b16 %v202, %v201
    %v242 = vpack.c.b16 %v204, %v203
    %v243 = vpack.c.b16 %v206, %v205
    %v244 = vpack.c.b16 %v208, %v207
    %v245 = vpack.c.b16 %v210, %v209
    %v246 = vpack.c.b16 %v212, %v211
    %v247 = vpack.c.b16 %v214, %v213
    %v248 = vpack.c.b16 %v216, %v215
    %v249 = vpack.c.b16 %v218, %v217
    %v250 = vpack.c.b16 %v220, %v219
    %v251 = vpack.c.b16 %v222, %v221
    %v252 = vpack.c.b16 %v224, %v223
    %v253 = vpack.c.b16 %v226, %v225
    %v254 = vpack.c.b16 %v228, %v227
    %v255 = vpack.c.b16 %v230, %v229
    %v256 = vpack.c.b16 %v232, %v231
    %281 = vmatprep.subr.bf16.mxu0 0
    %282 = vmatpush1.bf16.msra.mxu0 %v233
    %283 = vmatprep.subr.bf16.mxu0 0
    %284 = vmatpush1.bf16.msra.mxu0 %v234
    %285 = vmatprep.subr.bf16.mxu0 0
    %286 = vmatpush1.bf16.msra.mxu0 %v235
    %287 = vmatprep.subr.bf16.mxu0 0
    %288 = vmatpush1.bf16.msra.mxu0 %v236
    %289 = vmatprep.subr.bf16.mxu0 0
    %290 = vmatpush1.bf16.msra.mxu0 %v237
    %291 = vmatprep.subr.bf16.mxu0 0
    %292 = vmatpush1.bf16.msra.mxu0 %v238
    %293 = vmatprep.subr.bf16.mxu0 0
    %294 = vmatpush1.bf16.msra.mxu0 %v239
    %295 = vmatprep.subr.bf16.mxu0 0
    %296 = vmatpush1.bf16.msra.mxu0 %v240
    %297 = vmatprep.subr.bf16.mxu0 0
    %298 = vmatpush1.bf16.msra.mxu0 %v241
    %299 = vmatprep.subr.bf16.mxu0 0
    %300 = vmatpush1.bf16.msra.mxu0 %v242
    %301 = vmatprep.subr.bf16.mxu0 0
    %302 = vmatpush1.bf16.msra.mxu0 %v243
    %303 = vmatprep.subr.bf16.mxu0 0
    %304 = vmatpush1.bf16.msra.mxu0 %v244
    %305 = vmatprep.subr.bf16.mxu0 0
    %306 = vmatpush1.bf16.msra.mxu0 %v245
    %307 = vmatprep.subr.bf16.mxu0 0
    %308 = vmatpush1.bf16.msra.mxu0 %v246
    %309 = vmatprep.subr.bf16.mxu0 0
    %310 = vmatpush1.bf16.msra.mxu0 %v247
    %311 = vmatprep.subr.bf16.mxu0 0
    %312 = vmatpush1.bf16.msra.mxu0 %v248
    %313 = vmatprep.mubr.bf16.mxu0 %v97
    %314 = vmatmul.mubr.bf16.gmra.mrb[0].mxu0 %v120
    %v315 = vpop.f32.mrb[0].mxu0
    %v316 = vadd.f32 0.0, %v315
    %v317 = vpop.f32.mrb[0].mxu0
    %v318 = vpop.f32.mrb[0].mxu0
    %v319 = vadd.f32 0.0, %v318
    %v320 = vpop.f32.mrb[0].mxu0
    %321 = vmatprep.mubr.bf16.mxu0 %v98
    %322 = vmatmul.mubr.bf16.gmra.mrb[0].mxu0 %v121
    %v323 = vpop.f32.mrb[0].mxu0
    %v324 = vadd.f32 0.0, %v323
    %v325 = vpop.f32.mrb[0].mxu0
    %v326 = vpop.f32.mrb[0].mxu0
    %v327 = vadd.f32 0.0, %v326
    %v328 = vpop.f32.mrb[0].mxu0
    %329 = vdwg.mxu0
    %330 = vmatprep.subr.bf16.mxu0 0
    %331 = vmatpush1.bf16.msra.mxu0 %v249
    %332 = vmatprep.subr.bf16.mxu0 0
    %333 = vmatpush1.bf16.msra.mxu0 %v250
    %334 = vmatprep.subr.bf16.mxu0 0
    %335 = vmatpush1.bf16.msra.mxu0 %v251
    %336 = vmatprep.subr.bf16.mxu0 0
    %337 = vmatpush1.bf16.msra.mxu0 %v252
    %338 = vmatprep.subr.bf16.mxu0 0
    %339 = vmatpush1.bf16.msra.mxu0 %v253
    %340 = vmatprep.subr.bf16.mxu0 0
    %341 = vmatpush1.bf16.msra.mxu0 %v254
    %342 = vmatprep.subr.bf16.mxu0 0
    %343 = vmatpush1.bf16.msra.mxu0 %v255
    %344 = vmatprep.subr.bf16.mxu0 0
    %345 = vmatpush1.bf16.msra.mxu0 %v256
    %346 = vmatprep.subr.bf16.mxu0 0
    %347 = vmatpush1.bf16.msra.mxu0 0
    %348 = vmatprep.subr.bf16.mxu0 0
    %349 = vmatpush1.bf16.msra.mxu0 0
    %350 = vmatprep.subr.bf16.mxu0 0
    %351 = vmatpush1.bf16.msra.mxu0 0
    %352 = vmatprep.subr.bf16.mxu0 0
    %353 = vmatpush1.bf16.msra.mxu0 0
    %354 = vmatprep.subr.bf16.mxu0 0
    %355 = vmatpush1.bf16.msra.mxu0 0
    %356 = vmatprep.subr.bf16.mxu0 0
    %357 = vmatpush1.bf16.msra.mxu0 0
    %358 = vmatprep.subr.bf16.mxu0 0
    %359 = vmatpush1.bf16.msra.mxu0 0
    %360 = vmatprep.subr.bf16.mxu0 0
    %361 = vmatpush1.bf16.msra.mxu0 0
    %362 = vmatprep.mubr.bf16.mxu0 0
    %363 = vmatmul.mubr.bf16.gmra.mrb[0].mxu0 %v131
    %v364 = vpop.f32.mrb[0].mxu0
    %v365 = vadd.f32 %v316, %v364
    %v366 = vpop.f32.mrb[0].mxu0
    %v367 = vpop.f32.mrb[0].mxu0
    %v368 = vadd.f32 %v319, %v367
    %v369 = vpop.f32.mrb[0].mxu0
    %370 = vmatprep.mubr.bf16.mxu0 0
    %371 = vmatmul.mubr.bf16.gmra.mrb[0].mxu0 %v134
    %v372 = vpop.f32.mrb[0].mxu0
    %v373 = vadd.f32 %v324, %v372
    %v374 = vpop.f32.mrb[0].mxu0
    %v375 = vpop.f32.mrb[0].mxu0
    %v376 = vadd.f32 %v327, %v375
    %v377 = vpop.f32.mrb[0].mxu0
    %378 = vdwg.mxu0
    %v379 = vadd.f32 %v365, %v368
    %v380 = vadd.f32 %v379, %v373
    %v381 = vadd.f32 %v380, %v376
    %v382 = vrot.slane %v381, 4
    %v383 = vadd.f32 %v381, %v382
    %v384 = vrot.slane %v383, 2
    %v385 = vadd.f32 %v383, %v384
    %v386 = vrot.slane %v385, 1
    %v387 = vadd.f32 %v385, %v386
    %388 = vrot.lane.b32.xlu0 %v387, 8
    %v389 = vpop.permute.xlu0 %388
    %v390 = vadd.f32 %v387, %v389
    %391 = vrot.lane.b32.xlu0 %v390, 16
    %v392 = vpop.permute.xlu0 %391
    %v393 = vadd.f32 %v390, %v392
    %394 = vrot.lane.b32.xlu0 %v393, 32
    %v395 = vpop.permute.xlu0 %394
    %v396 = vadd.f32 %v393, %v395
    %397 = vrot.lane.b32.xlu0 %v396, 64
    %v398 = vpop.permute.xlu0 %397
    %v399 = vadd.f32 %v396, %v398
    %v400 = vmul.f32 %v399, 0.001953125
    %v401 = vlaneseq
    %v402 = vshrl.u32 %v401, 7
    %v403 = vsub.s32 0, %v402
    %v404 = vrot.slane %v400, %v403
    %v405 = vsub.f32 %v365, %v404
    %v406 = vsub.f32 %v368, %v404
    %v407 = vsub.f32 %v373, %v404
    %v408 = vsub.f32 %v376, %v404
    %v409 = vmul.f32 %v405, %v405
    %v410 = vmul.f32 %v406, %v406
    %v411 = vmul.f32 %v407, %v407
    %v412 = vmul.f32 %v408, %v408
    %v413 = vadd.f32 %v409, %v410
    %v414 = vadd.f32 %v413, %v411
    %v415 = vadd.f32 %v414, %v412
    %v416 = vrot.slane %v415, 4
    %v417 = vadd.f32 %v415, %v416
    %v418 = vrot.slane %v417, 2
    %v419 = vadd.f32 %v417, %v418
    %v420 = vrot.slane %v419, 1
    %v421 = vadd.f32 %v419, %v420
    %422 = vrot.lane.b32.xlu0 %v421, 8
    %v423 = vpop.permute.xlu0 %422
    %v424 = vadd.f32 %v421, %v423
    %425 = vrot.lane.b32.xlu0 %v424, 16
    %v426 = vpop.permute.xlu0 %425
    %v427 = vadd.f32 %v424, %v426
    %428 = vrot.lane.b32.xlu0 %v427, 32
    %v429 = vpop.permute.xlu0 %428
    %v430 = vadd.f32 %v427, %v429
    %431 = vrot.lane.b32.xlu0 %v430, 64
    %v432 = vpop.permute.xlu0 %431
    %v433 = vadd.f32 %v430, %v432
    %v434 = vmul.f32 %v433, 0.001953125
    %v435 = vadd.f32 %v434, 1e-05
    %v436 = vrsqrt.pop %v435
    %v437 = vmul.f32 %v48, %v436
    %v438 = vlaneseq
    %v439 = vshrl.u32 %v438, 7
    %v440 = vsub.s32 0, %v439
    %v441 = vrot.slane %v437, %v440
    %v442 = vmul.f32 %v405, %v441
    %v443 = vmul.f32 %v406, %v441
    %v444 = vmul.f32 %v407, %v441
    %v445 = vmul.f32 %v408, %v441
    %v446 = vlaneseq
    %v447 = vshrl.u32 %v446, 7
    %v448 = vsub.s32 1, %v447
    %v449 = vrot.slane %v48, %v448
    %v450 = vadd.f32 %v442, %v449
    %v451 = vadd.f32 %v443, %v449
    %v452 = vadd.f32 %v444, %v449
    %v453 = vadd.f32 %v445, %v449
    %v454 = vmax.f32 %v450, 0.0
    %v455 = vmax.f32 %v451, 0.0
    %v456 = vmax.f32 %v452, 0.0
    %v457 = vmax.f32 %v453, 0.0
    %s458 = scalar_lea.vmem [#allocation5], 192
    %v459 = vld [vmem:[%s458] sm:$0xf]
    %v460 = vld [vmem:[%s458 + $0x4] sm:$0xf]
    %v461 = vld [vmem:[%s458 + $0x8] sm:$0xf]
    %v462 = vld [vmem:[%s458 + $0xc] sm:$0xf]
    %v463 = vld [vmem:[%s458 + $0x10] sm:$0xf]
    %v464 = vld [vmem:[%s458 + $0x14] sm:$0xf]
    %v465 = vld [vmem:[%s458 + $0x18] sm:$0xf]
    %v466 = vld [vmem:[%s458 + $0x1c] sm:$0xf]
    %v467 = vld [vmem:[%s458 + $0x20] sm:$0xf]
    %v468 = vld [vmem:[%s458 + $0x24] sm:$0xf]
    %v469 = vld [vmem:[%s458 + $0x28] sm:$0xf]
    %v470 = vld [vmem:[%s458 + $0x2c] sm:$0xf]
    %v471 = vld [vmem:[%s458 + $0x30] sm:$0xf]
    %v472 = vld [vmem:[%s458 + $0x34] sm:$0xf]
    %v473 = vld [vmem:[%s458 + $0x38] sm:$0xf]
    %v474 = vld [vmem:[%s458 + $0x3c] sm:$0xf]
    %v475 = vld [vmem:[%s458 + $0x40] sm:$0xf]
    %v476 = vld [vmem:[%s458 + $0x44] sm:$0xf]
    %v477 = vld [vmem:[%s458 + $0x48] sm:$0xf]
    %v478 = vld [vmem:[%s458 + $0x4c] sm:$0xf]
    %v479 = vld [vmem:[%s458 + $0x50] sm:$0xf]
    %v480 = vld [vmem:[%s458 + $0x54] sm:$0xf]
    %v481 = vld [vmem:[%s458 + $0x58] sm:$0xf]
    %v482 = vld [vmem:[%s458 + $0x5c] sm:$0xf]
    %v483 = vld [vmem:[%s458 + $0x60] sm:$0xf]
    %v484 = vld [vmem:[%s458 + $0x64] sm:$0xf]
    %v485 = vld [vmem:[%s458 + $0x68] sm:$0xf]
    %v486 = vld [vmem:[%s458 + $0x6c] sm:$0xf]
    %v487 = vld [vmem:[%s458 + $0x70] sm:$0xf]
    %v488 = vld [vmem:[%s458 + $0x74] sm:$0xf]
    %v489 = vld [vmem:[%s458 + $0x78] sm:$0xf]
    %v490 = vld [vmem:[%s458 + $0x7c] sm:$0xf]
    %v491 = vld [vmem:[%s458 + $0x80] sm:$0xf]
    %v492 = vld [vmem:[%s458 + $0x84] sm:$0xf]
    %v493 = vld [vmem:[%s458 + $0x88] sm:$0xf]
    %v494 = vld [vmem:[%s458 + $0x8c] sm:$0xf]
    %v495 = vld [vmem:[%s458 + $0x90] sm:$0xf]
    %v496 = vld [vmem:[%s458 + $0x94] sm:$0xf]
    %v497 = vld [vmem:[%s458 + $0x98] sm:$0xf]
    %v498 = vld [vmem:[%s458 + $0x9c] sm:$0xf]
    %v499 = vld [vmem:[%s458 + $0xa0] sm:$0xf]
    %v500 = vld [vmem:[%s458 + $0xa4] sm:$0xf]
    %v501 = vld [vmem:[%s458 + $0xa8] sm:$0xf]
    %v502 = vld [vmem:[%s458 + $0xac] sm:$0xf]
    %v503 = vld [vmem:[%s458 + $0xb0] sm:$0xf]
    %v504 = vld [vmem:[%s458 + $0xb4] sm:$0xf]
    %v505 = vld [vmem:[%s458 + $0xb8] sm:$0xf]
    %v506 = vld [vmem:[%s458 + $0xbc] sm:$0xf]
    %v507 = vpack.c.bf16 %v455, %v454
    %v508 = vpack.c.bf16 %v457, %v456
    %v510 = vshrl.u32 %v507, 16
    %v512 = vrot.slane %v510, 7
    %v513 = vshll.u32 %v507, 16
    %v515 = vor.u32 %v512, %v513
    %v517 = vshrl.u32 %v508, 16
    %v519 = vrot.slane %v517, 7
    %v520 = vshll.u32 %v508, 16
    %v522 = vor.u32 %v519, %v520
    %v527 = vsel %vm119, 0, %v515
    %v528 = vsel %vm119, 0, %v522
    %v529 = vsel %vm119, %v512, 0
    %v530 = vsel %vm119, %v519, 0
    %v535 = vrot.slane %v527, 1
    %v536 = vrot.slane %v529, 1
    %v537 = vsel %vm128, %v535, %v536
    %v538 = vrot.slane %v528, 1
    %v539 = vrot.slane %v530, 1
    %v540 = vsel %vm128, %v538, %v539
    %v591 = vunpack.c.l.b16 %v459
    %v592 = vunpack.c.l.b16 %v460
    %v593 = vunpack.c.l.b16 %v461
    %v594 = vunpack.c.l.b16 %v462
    %v595 = vunpack.c.l.b16 %v463
    %v596 = vunpack.c.l.b16 %v464
    %v597 = vunpack.c.l.b16 %v465
    %v598 = vunpack.c.l.b16 %v466
    %v599 = vunpack.c.l.b16 %v467
    %v600 = vunpack.c.l.b16 %v468
    %v601 = vunpack.c.l.b16 %v469
    %v602 = vunpack.c.l.b16 %v470
    %v603 = vunpack.c.l.b16 %v471
    %v604 = vunpack.c.l.b16 %v472
    %v605 = vunpack.c.l.b16 %v473
    %v606 = vunpack.c.l.b16 %v474
    %v607 = vunpack.c.l.b16 %v475
    %v608 = vunpack.c.l.b16 %v476
    %v609 = vunpack.c.l.b16 %v477
    %v610 = vunpack.c.l.b16 %v478
    %v611 = vunpack.c.l.b16 %v479
    %v612 = vunpack.c.l.b16 %v480
    %v613 = vunpack.c.l.b16 %v481
    %v614 = vunpack.c.l.b16 %v482
    %v615 = vunpack.c.l.b16 %v483
    %v616 = vunpack.c.l.b16 %v484
    %v617 = vunpack.c.l.b16 %v485
    %v618 = vunpack.c.l.b16 %v486
    %v619 = vunpack.c.l.b16 %v487
    %v620 = vunpack.c.l.b16 %v488
    %v621 = vunpack.c.l.b16 %v489
    %v622 = vunpack.c.l.b16 %v490
    %v623 = vunpack.c.l.b16 %v491
    %v624 = vunpack.c.l.b16 %v492
    %v625 = vunpack.c.l.b16 %v493
    %v626 = vunpack.c.l.b16 %v494
    %v627 = vunpack.c.l.b16 %v495
    %v628 = vunpack.c.l.b16 %v496
    %v629 = vunpack.c.l.b16 %v497
    %v630 = vunpack.c.l.b16 %v498
    %v631 = vunpack.c.l.b16 %v499
    %v632 = vunpack.c.l.b16 %v500
    %v633 = vunpack.c.l.b16 %v501
    %v634 = vunpack.c.l.b16 %v502
    %v635 = vunpack.c.l.b16 %v503
    %v636 = vunpack.c.l.b16 %v504
    %v637 = vunpack.c.l.b16 %v505
    %v638 = vunpack.c.l.b16 %v506
    %v639 = vpack.c.b16 %v592, %v591
    %v640 = vpack.c.b16 %v594, %v593
    %v641 = vpack.c.b16 %v596, %v595
    %v642 = vpack.c.b16 %v598, %v597
    %v643 = vpack.c.b16 %v600, %v599
    %v644 = vpack.c.b16 %v602, %v601
    %v645 = vpack.c.b16 %v604, %v603
    %v646 = vpack.c.b16 %v606, %v605
    %v647 = vpack.c.b16 %v608, %v607
    %v648 = vpack.c.b16 %v610, %v609
    %v649 = vpack.c.b16 %v612, %v611
    %v650 = vpack.c.b16 %v614, %v613
    %v651 = vpack.c.b16 %v616, %v615
    %v652 = vpack.c.b16 %v618, %v617
    %v653 = vpack.c.b16 %v620, %v619
    %v654 = vpack.c.b16 %v622, %v621
    %v655 = vpack.c.b16 %v624, %v623
    %v656 = vpack.c.b16 %v626, %v625
    %v657 = vpack.c.b16 %v628, %v627
    %v658 = vpack.c.b16 %v630, %v629
    %v659 = vpack.c.b16 %v632, %v631
    %v660 = vpack.c.b16 %v634, %v633
    %v661 = vpack.c.b16 %v636, %v635
    %v662 = vpack.c.b16 %v638, %v637
    %687 = vmatprep.subr.bf16.mxu0 0
    %688 = vmatpush1.bf16.msra.mxu0 %v639
    %689 = vmatprep.subr.bf16.mxu0 0
    %690 = vmatpush1.bf16.msra.mxu0 %v640
    %691 = vmatprep.subr.bf16.mxu0 0
    %692 = vmatpush1.bf16.msra.mxu0 %v641
    %693 = vmatprep.subr.bf16.mxu0 0
    %694 = vmatpush1.bf16.msra.mxu0 %v642
    %695 = vmatprep.subr.bf16.mxu0 0
    %696 = vmatpush1.bf16.msra.mxu0 %v643
    %697 = vmatprep.subr.bf16.mxu0 0
    %698 = vmatpush1.bf16.msra.mxu0 %v644
    %699 = vmatprep.subr.bf16.mxu0 0
    %700 = vmatpush1.bf16.msra.mxu0 %v645
    %701 = vmatprep.subr.bf16.mxu0 0
    %702 = vmatpush1.bf16.msra.mxu0 %v646
    %703 = vmatprep.subr.bf16.mxu0 0
    %704 = vmatpush1.bf16.msra.mxu0 %v647
    %705 = vmatprep.subr.bf16.mxu0 0
    %706 = vmatpush1.bf16.msra.mxu0 %v648
    %707 = vmatprep.subr.bf16.mxu0 0
    %708 = vmatpush1.bf16.msra.mxu0 %v649
    %709 = vmatprep.subr.bf16.mxu0 0
    %710 = vmatpush1.bf16.msra.mxu0 %v650
    %711 = vmatprep.subr.bf16.mxu0 0
    %712 = vmatpush1.bf16.msra.mxu0 %v651
    %713 = vmatprep.subr.bf16.mxu0 0
    %714 = vmatpush1.bf16.msra.mxu0 %v652
    %715 = vmatprep.subr.bf16.mxu0 0
    %716 = vmatpush1.bf16.msra.mxu0 %v653
    %717 = vmatprep.subr.bf16.mxu0 0
    %718 = vmatpush1.bf16.msra.mxu0 %v654
    %719 = vmatprep.mubr.bf16.mxu0 %v507
    %720 = vmatmul.mubr.bf16.gmra.mrb[0].mxu0 %v527
    %v721 = vpop.f32.mrb[0].mxu0
    %v722 = vadd.f32 0.0, %v721
    %v723 = vpop.f32.mrb[0].mxu0
    %v724 = vpop.f32.mrb[0].mxu0
    %v725 = vadd.f32 0.0, %v724
    %v726 = vpop.f32.mrb[0].mxu0
    %727 = vmatprep.mubr.bf16.mxu0 %v508
    %728 = vmatmul.mubr.bf16.gmra.mrb[0].mxu0 %v528
    %v729 = vpop.f32.mrb[0].mxu0
    %v730 = vadd.f32 0.0, %v729
    %v731 = vpop.f32.mrb[0].mxu0
    %v732 = vpop.f32.mrb[0].mxu0
    %v733 = vadd.f32 0.0, %v732
    %v734 = vpop.f32.mrb[0].mxu0
    %735 = vdwg.mxu0
    %736 = vmatprep.subr.bf16.mxu0 0
    %737 = vmatpush1.bf16.msra.mxu0 %v655
    %738 = vmatprep.subr.bf16.mxu0 0
    %739 = vmatpush1.bf16.msra.mxu0 %v656
    %740 = vmatprep.subr.bf16.mxu0 0
    %741 = vmatpush1.bf16.msra.mxu0 %v657
    %742 = vmatprep.subr.bf16.mxu0 0
    %743 = vmatpush1.bf16.msra.mxu0 %v658
    %744 = vmatprep.subr.bf16.mxu0 0
    %745 = vmatpush1.bf16.msra.mxu0 %v659
    %746 = vmatprep.subr.bf16.mxu0 0
    %747 = vmatpush1.bf16.msra.mxu0 %v660
    %748 = vmatprep.subr.bf16.mxu0 0
    %749 = vmatpush1.bf16.msra.mxu0 %v661
    %750 = vmatprep.subr.bf16.mxu0 0
    %751 = vmatpush1.bf16.msra.mxu0 %v662
    %752 = vmatprep.subr.bf16.mxu0 0
    %753 = vmatpush1.bf16.msra.mxu0 0
    %754 = vmatprep.subr.bf16.mxu0 0
    %755 = vmatpush1.bf16.msra.mxu0 0
    %756 = vmatprep.subr.bf16.mxu0 0
    %757 = vmatpush1.bf16.msra.mxu0 0
    %758 = vmatprep.subr.bf16.mxu0 0
    %759 = vmatpush1.bf16.msra.mxu0 0
    %760 = vmatprep.subr.bf16.mxu0 0
    %761 = vmatpush1.bf16.msra.mxu0 0
    %762 = vmatprep.subr.bf16.mxu0 0
    %763 = vmatpush1.bf16.msra.mxu0 0
    %764 = vmatprep.subr.bf16.mxu0 0
    %765 = vmatpush1.bf16.msra.mxu0 0
    %766 = vmatprep.subr.bf16.mxu0 0
    %767 = vmatpush1.bf16.msra.mxu0 0
    %768 = vmatprep.mubr.bf16.mxu0 0
    %769 = vmatmul.mubr.bf16.gmra.mrb[0].mxu0 %v537
    %v770 = vpop.f32.mrb[0].mxu0
    %v771 = vadd.f32 %v722, %v770
    %v772 = vpop.f32.mrb[0].mxu0
    %v773 = vpop.f32.mrb[0].mxu0
    %v774 = vadd.f32 %v725, %v773
    %v775 = vpop.f32.mrb[0].mxu0
    %776 = vmatprep.mubr.bf16.mxu0 0
    %777 = vmatmul.mubr.bf16.gmra.mrb[0].mxu0 %v540
    %v778 = vpop.f32.mrb[0].mxu0
    %v779 = vadd.f32 %v730, %v778
    %v780 = vpop.f32.mrb[0].mxu0
    %v781 = vpop.f32.mrb[0].mxu0
    %v782 = vadd.f32 %v733, %v781
    %v783 = vpop.f32.mrb[0].mxu0
    %784 = vdwg.mxu0
    %v785 = vadd.f32 %v771, %v774
    %v786 = vadd.f32 %v785, %v779
    %v787 = vadd.f32 %v786, %v782
    %v788 = vrot.slane %v787, 4
    %v789 = vadd.f32 %v787, %v788
    %v790 = vrot.slane %v789, 2
    %v791 = vadd.f32 %v789, %v790
    %v792 = vrot.slane %v791, 1
    %v793 = vadd.f32 %v791, %v792
    %794 = vrot.lane.b32.xlu0 %v793, 8
    %v795 = vpop.permute.xlu0 %794
    %v796 = vadd.f32 %v793, %v795
    %797 = vrot.lane.b32.xlu0 %v796, 16
    %v798 = vpop.permute.xlu0 %797
    %v799 = vadd.f32 %v796, %v798
    %800 = vrot.lane.b32.xlu0 %v799, 32
    %v801 = vpop.permute.xlu0 %800
    %v802 = vadd.f32 %v799, %v801
    %803 = vrot.lane.b32.xlu0 %v802, 64
    %v804 = vpop.permute.xlu0 %803
    %v805 = vadd.f32 %v802, %v804
    %v806 = vmul.f32 %v805, 0.001953125
    %v807 = vlaneseq
    %v808 = vshrl.u32 %v807, 7
    %v809 = vsub.s32 0, %v808
    %v810 = vrot.slane %v806, %v809
    %v811 = vsub.f32 %v771, %v810
    %v812 = vsub.f32 %v774, %v810
    %v813 = vsub.f32 %v779, %v810
    %v814 = vsub.f32 %v782, %v810
    %v815 = vmul.f32 %v811, %v811
    %v816 = vmul.f32 %v812, %v812
    %v817 = vmul.f32 %v813, %v813
    %v818 = vmul.f32 %v814, %v814
    %v819 = vadd.f32 %v815, %v816
    %v820 = vadd.f32 %v819, %v817
    %v821 = vadd.f32 %v820, %v818
    %v822 = vrot.slane %v821, 4
    %v823 = vadd.f32 %v821, %v822
    %v824 = vrot.slane %v823, 2
    %v825 = vadd.f32 %v823, %v824
    %v826 = vrot.slane %v825, 1
    %v827 = vadd.f32 %v825, %v826
    %828 = vrot.lane.b32.xlu0 %v827, 8
    %v829 = vpop.permute.xlu0 %828
    %v830 = vadd.f32 %v827, %v829
    %831 = vrot.lane.b32.xlu0 %v830, 16
    %v832 = vpop.permute.xlu0 %831
    %v833 = vadd.f32 %v830, %v832
    %834 = vrot.lane.b32.xlu0 %v833, 32
    %v835 = vpop.permute.xlu0 %834
    %v836 = vadd.f32 %v833, %v835
    %837 = vrot.lane.b32.xlu0 %v836, 64
    %v838 = vpop.permute.xlu0 %837
    %v839 = vadd.f32 %v836, %v838
    %v840 = vmul.f32 %v839, 0.001953125
    %v841 = vadd.f32 %v840, 1e-05
    %v842 = vrsqrt.pop %v841
    %v844 = vrot.slane %v842, 6
    %v846 = vmul.f32 %v48, %v844
    %v847 = vlaneseq
    %v848 = vshrl.u32 %v847, 7
    %v849 = vsub.s32 2, %v848
    %v850 = vrot.slane %v846, %v849
    %v851 = vmul.f32 %v811, %v850
    %v852 = vmul.f32 %v812, %v850
    %v853 = vmul.f32 %v813, %v850
    %v854 = vmul.f32 %v814, %v850
    %v855 = vlaneseq
    %v856 = vshrl.u32 %v855, 7
    %v857 = vsub.s32 3, %v856
    %v858 = vrot.slane %v48, %v857
    %v859 = vadd.f32 %v851, %v858
    %v860 = vadd.f32 %v852, %v858
    %v861 = vadd.f32 %v853, %v858
    %v862 = vadd.f32 %v854, %v858
    %v863 = vadd.f32 %v859, %v44
    %v864 = vadd.f32 %v860, %v45
    %v865 = vadd.f32 %v861, %v46
    %v866 = vadd.f32 %v862, %v47
    %v867 = vmax.f32 %v863, 0.0
    %v868 = vmax.f32 %v864, 0.0
    %v869 = vmax.f32 %v865, 0.0
    %v870 = vmax.f32 %v866, 0.0
    %871 = vst [vmem:[#allocation7] sm:$0xff] %v867
    %872 = vst [vmem:[#allocation7 + $0x8] sm:$0xff] %v868
    %873 = vst [vmem:[#allocation7 + $0x10] sm:$0xff] %v869
    %874 = vst [vmem:[#allocation7 + $0x18] sm:$0xff] %v870
    // Predicated region
    $region22: #{tpu_custom_call.1} parent=1 // pred_check
      _
    $region23: #{tpu_custom_call.1} parent=1 // pred_check_branch
      %876 = sbr.rel (0) target = $region25
    $region24: #{tpu_custom_call.1} parent=1 // pred_region
      %s878 = ssub.s32 512, 512
      %879 = vsyncadd [#allocation4], %s878
      %s880 = sshll.u32 [#allocation7], 4
      %s881 = int_to_ptr.vmem [resolvable:$true] %s880
      %886 = dma.vmem_to_hbm [thread:$0]  %s881, 512, %s3, [#allocation4], 128, 128, 8
    $region25: #{tpu_custom_call.1} parent=1 // pred_fallthru
      _
    // Predicated region
    $region26: #{tpu_custom_call.1} parent=1 // pred_check
      _
    $region27: #{tpu_custom_call.1} parent=1 // pred_check_branch
      %888 = sbr.rel (0) target = $region29
    $region28: #{tpu_custom_call.1} parent=1 // pred_region
      %889 = dma.done [#allocation4], 512
    $region29: #{tpu_custom_call.1} parent=1 // pred_fallthru
      _
    %890 = vsyncpa [#allocation3], 1
    %891 = vsyncpa [#allocation6], 1
    %892 = vsyncpa [#allocation4], 1

</llo_original>
